<compile_context>
chip_gen: v7x
topology: tpu7x:2x2x1
jax: 0.10.0
libtpu: 0.0.40
codegen_flags: <defaults>
</compile_context>

<pallas_src>
import functools

import jax
import jax.numpy as jnp
from jax.experimental import pallas as pl
from jax.experimental.pallas import tpu as pltpu

_MIB = 1024 * 1024


def _round_up(x, m):
    return -(-x // m) * m


def _sare_kernel(pred_ref, target_ref, out_ref, *, epsilon):
    pred = pred_ref[...].astype(jnp.float32)
    target = target_ref[...].astype(jnp.float32)
    abs_err = jnp.abs((pred - target) / (target + epsilon))
    # sigmoid(x) = 0.5 * tanh(x/2) + 0.5 : one EUP transcendental + mul/add,
    # vs exp + exact divide (EUP recip + Newton refinement on the VALU).
    # Exact to ~1 ulp of the reference form; keeps the kernel HBM-bound.
    out_ref[...] = (0.5 * jnp.tanh(0.5 * abs_err) + 0.5).astype(out_ref.dtype)


def _sare_jax(pred, target, epsilon):
    # Plain-JAX path for tiny inputs / ragged tails (same math as the kernel).
    p = pred.astype(jnp.float32)
    t = target.astype(jnp.float32)
    abs_err = jnp.abs((p - t) / (t + epsilon))
    return (0.5 * jnp.tanh(0.5 * abs_err) + 0.5).astype(pred.dtype)


def _chip_info():
    """Best-effort TPU generation probe.

    Returns (tensorcores_per_chip, default_block_bytes). Any detection failure
    falls back to the safe single-core / mid-size-block configuration (the
    forced megacore split only pays on 2-TC chips, so 1 is the safe default).
    """
    kind = ""
    try:
        kind = jax.devices()[0].device_kind.lower()
    except Exception:
        pass
    if "v5e" in kind or "v5 lite" in kind or "v5lite" in kind:
        # v5e: 1 TC, 16 MiB default scoped VMEM -> keep ~2 MiB blocks.
        return 1, 2 * _MIB
    if "v7" in kind:
        # v7x: 2 TCs/chip, 64 MiB VMEM per TC -> 4 MiB blocks + grid sharding.
        return 2, 4 * _MIB
    # v6e (1 TC, 128 MiB physical VMEM) and anything unknown.
    return 1, 4 * _MIB


def sigmoid_absolute_relative_error_loss(pred, target, epsilon=1e-4,
                                         *, target_block_bytes=None):
    assert pred.shape == target.shape and pred.dtype == target.dtype
    orig_shape = pred.shape
    dtype = pred.dtype
    n = pred.size
    itemsize = jnp.dtype(dtype).itemsize
    # Native sublane packing: 8 rows for 4-byte, 16 for 2-byte, 32 for 1-byte.
    sub = max(8, 32 // itemsize)

    num_cores, default_blk_bytes = _chip_info()
    if target_block_bytes is None:
        target_block_bytes = default_blk_bytes

    pred_flat = pred.reshape(-1)       # contiguous flatten: free bitcast
    target_flat = target.reshape(-1)

    # Widest lane-dense slab that still has at least one full (sub, lanes)
    # row-group -> unmasked long stores, fewer DMA descriptors per block.
    lanes = 128
    for cand in (1024, 512, 256):
        if n >= sub * cand:
            lanes = cand
            break

    if n < sub * lanes:
        # Smaller than one minimal tile: not worth a kernel launch.
        return _sare_jax(pred_flat, target_flat, epsilon).reshape(orig_shape)

    # Bulk/tail split at *lane* granularity so the expensive stitch below only
    # triggers when n % lanes != 0; a ragged last row-group (rows_bulk not a
    # multiple of `sub`) is handled by Pallas' masked edge blocks.
    n_bulk = (n // lanes) * lanes
    tail_n = n - n_bulk
    rows_bulk = n_bulk // lanes                       # >= sub by construction
    pred2d = pred_flat[:n_bulk].reshape(rows_bulk, lanes)
    target2d = target_flat[:n_bulk].reshape(rows_bulk, lanes)

    # Block rows from the per-chip byte budget (multiple of `sub`, never more
    # full row-groups than the slab provides).
    blk_elems = max(sub * lanes, target_block_bytes // itemsize)
    tm = max(sub, (blk_elems // lanes // sub) * sub)
    tm = min(tm, max(sub, (rows_bulk // sub) * sub))

    if num_cores > 1:
        # v7x megacore shaping: >= 2 steps per TensorCore so double-buffering
        # engages on each core, and a grid length that is a multiple of the
        # core count for load balance. Very small slabs (rows_bulk below
        # 2*num_cores row-groups) stay a single block on one core.
        min_steps = 2 * num_cores
        if rows_bulk >= min_steps * sub:
            tm = min(tm, max(sub, (rows_bulk // min_steps // sub) * sub))
        steps = -(-rows_bulk // tm)
        if steps % num_cores and rows_bulk >= num_cores * sub:
            steps = _round_up(steps, num_cores)
            tm = max(sub, min(tm, _round_up(-(-rows_bulk // steps), sub)))

    grid = (pl.cdiv(rows_bulk, tm),)

    blk_bytes = tm * lanes * itemsize
    # 2 inputs + 1 output, double-buffered => 6 live blocks; add headroom and
    # cap at 48 MiB so the same launch fits v7x's 64 MiB per-TC VMEM.
    vmem_limit = int(min(48 * _MIB, max(16 * _MIB, 8 * blk_bytes)))

    out2d = pl.pallas_call(
        functools.partial(_sare_kernel, epsilon=epsilon),
        out_shape=jax.ShapeDtypeStruct((rows_bulk, lanes), dtype),
        grid_spec=pltpu.PrefetchScalarGridSpec(
            num_scalar_prefetch=0,
            grid=grid,
            in_specs=[
                pl.BlockSpec((tm, lanes), lambda i: (i, 0)),
                pl.BlockSpec((tm, lanes), lambda i: (i, 0)),
            ],
            out_specs=pl.BlockSpec((tm, lanes), lambda i: (i, 0)),
        ),
        compiler_params=pltpu.CompilerParams(
            dimension_semantics=("parallel",),
            vmem_limit_bytes=vmem_limit),
        cost_estimate=pl.CostEstimate(
            flops=6 * n_bulk,
            transcendentals=2 * n_bulk,           # tanh + divide per element
            bytes_accessed=3 * n_bulk * itemsize),
    )(pred2d, target2d)

    out_bulk = out2d.reshape(-1)
    if tail_n == 0:
        return out_bulk.reshape(orig_shape)
    # TODO(synk): this concatenate re-reads the bulk output and re-writes the
    # full n-element result (~+2n elements of HBM traffic). It only triggers
    # when n % lanes != 0 (tail < lanes elements); emitting the tail from
    # inside the kernel would need a padded or 1-D layout whose extra input
    # copies cost at least as much, so the stitch is kept and documented.
    out_tail = _sare_jax(pred_flat[n_bulk:], target_flat[n_bulk:], epsilon)
    return jnp.concatenate([out_bulk, out_tail]).reshape(orig_shape)


def _reference(pred, target, epsilon=1e-4):
    error = (pred - target) / (target + epsilon)
    return jax.nn.sigmoid(jnp.abs(error))


if __name__ == "__main__":
    key = jax.random.PRNGKey(0)
    k1, k2 = jax.random.split(key)

    # NCHW inputs, same shape for pred and target (no broadcasting in module).
    pred = jax.random.normal(k1, (2, 4, 16, 16), dtype=jnp.float32)
    target = jax.random.normal(k2, (2, 4, 16, 16), dtype=jnp.float32)

    out = jax.block_until_ready(
        sigmoid_absolute_relative_error_loss(pred, target, epsilon=1e-4))
    ref = _reference(pred, target, epsilon=1e-4)
    assert out.shape == ref.shape and out.dtype == ref.dtype
    assert jnp.allclose(out, ref, atol=1e-5, rtol=1e-5)

    # Exercise the ragged path (element count not a multiple of the lane width).
    p2 = jax.random.normal(k1, (3, 5, 7, 11), dtype=jnp.float32)
    t2 = jax.random.normal(k2, (3, 5, 7, 11), dtype=jnp.float32)
    out2 = jax.block_until_ready(
        sigmoid_absolute_relative_error_loss(p2, t2, epsilon=1e-4))
    ref2 = _reference(p2, t2, epsilon=1e-4)
    assert out2.shape == ref2.shape and out2.dtype == ref2.dtype
    assert jnp.allclose(out2, ref2, atol=1e-5, rtol=1e-5)

    print("KERNEL_OK")
</pallas_src>

<mosaic_0001>
module attributes {stable_mosaic.version = 11 : i64} {
  func.func @_sare_kernel(%arg0: i32, %arg1: memref<8x256xf32, #tpu.memory_space<vmem>>, %arg2: memref<8x256xf32, #tpu.memory_space<vmem>>, %arg3: memref<8x256xf32, #tpu.memory_space<vmem>>) attributes {dimension_semantics = [#tpu.dimension_semantics<parallel>], iteration_bounds = array<i64: 1>, scalar_prefetch = 0 : i64, scratch_operands = 0 : i64, tpu.core_type = #tpu.core_type<tc>, window_params = [{transform_indices = @transform_0, window_bounds = array<i64: 8, 256>}, {transform_indices = @transform_1, window_bounds = array<i64: 8, 256>}, {transform_indices = @transform_2, window_bounds = array<i64: 8, 256>}]} {
    %c0 = arith.constant 0 : index
    %c0_0 = arith.constant 0 : index
    %0 = vector.load %arg1[%c0, %c0_0] : memref<8x256xf32, #tpu.memory_space<vmem>>, vector<8x256xf32>
    %c0_1 = arith.constant 0 : index
    %c0_2 = arith.constant 0 : index
    %1 = vector.load %arg2[%c0_1, %c0_2] : memref<8x256xf32, #tpu.memory_space<vmem>>, vector<8x256xf32>
    %2 = arith.subf %0, %1 : vector<8x256xf32>
    %cst = arith.constant 9.99999974E-5 : f32
    %3 = vector.broadcast %cst : f32 to vector<8x256xf32>
    %4 = arith.addf %1, %3 : vector<8x256xf32>
    %5 = arith.divf %2, %4 : vector<8x256xf32>
    %6 = math.absf %5 : vector<8x256xf32>
    %cst_3 = arith.constant 5.000000e-01 : f32
    %7 = vector.broadcast %cst_3 : f32 to vector<8x256xf32>
    %8 = arith.mulf %7, %6 : vector<8x256xf32>
    %9 = math.tanh %8 : vector<8x256xf32>
    %cst_4 = arith.constant 5.000000e-01 : f32
    %10 = vector.broadcast %cst_4 : f32 to vector<8x256xf32>
    %11 = arith.mulf %10, %9 : vector<8x256xf32>
    %cst_5 = arith.constant 5.000000e-01 : f32
    %12 = vector.broadcast %cst_5 : f32 to vector<8x256xf32>
    %13 = arith.addf %11, %12 : vector<8x256xf32>
    %c0_6 = arith.constant 0 : index
    %c0_7 = arith.constant 0 : index
    %14 = vector.load %arg3[%c0_6, %c0_7] : memref<8x256xf32, #tpu.memory_space<vmem>>, vector<8x256xf32>
    tpu.vector_store %arg3[%c0_6, %c0_7], %13 {strides = array<i32>} : memref<8x256xf32, #tpu.memory_space<vmem>>, vector<8x256xf32>,
    return
  }
  func.func @transform_0(%arg0: i32) -> (i32, i32) {
    %c0_i32 = arith.constant 0 : i32
    %c0_i32_0 = arith.constant 0 : i32
    return %arg0, %c0_i32 : i32, i32
  }
  func.func @transform_1(%arg0: i32) -> (i32, i32) {
    %c0_i32 = arith.constant 0 : i32
    %c0_i32_0 = arith.constant 0 : i32
    return %arg0, %c0_i32 : i32, i32
  }
  func.func @transform_2(%arg0: i32) -> (i32, i32) {
    %c0_i32 = arith.constant 0 : i32
    %c0_i32_0 = arith.constant 0 : i32
    return %arg0, %c0_i32 : i32, i32
  }
}

</mosaic_0001>

<llo_original>
// kernel: tpu_custom_call.1
$region0: #{tpu_custom_call.1}
  #allocation0 [shape = 'u32[]', space=smem, size = 0x4, offset = 0x4, fixed_abs, tag = 'smem constant byte address 0x4 - core index']
  #allocation1 [shape = 'u32[144,128]{1,0:T(1,128)}', space=vmem, size = 0x12000, scoped, tag = 'internal scratch']
  %s0 = inlined_call_operand.hbm [shape: f32[8,256], index: 0, kind: input, shape index: {}]
  %s1 = inlined_call_operand.hbm [shape: f32[8,256], index: 1, kind: input, shape index: {}]
  %s2 = inlined_call_operand.hbm [shape: f32[8,256], index: 2, kind: output, shape index: {}]
  %s3 = sld [smem:[#allocation0]]
  $region26: #{tpu_custom_call.1} parent=0
    _
  %s5 = ssub.s32 1, %s3
  %s6 = scalar_select 0, %s5, %s3
  $region1: #{tpu_custom_call.1} parent=0
    #allocation2 [shape = 'u8[8192]{0}', space=vmem, size = 0x2000, scoped, tag = 'input window, operand 0, single buffered']
    #allocation3 [shape = 's32[1]{0}', space=sflag, size = 0x4, scoped, tag = 'scoped memory for tpu_custom_call.1']
    #allocation4 [shape = 's32[1]{0}', space=sflag, size = 0x4, scoped, tag = 'scoped memory for tpu_custom_call.1']
    #allocation5 [shape = 'u8[8192]{0}', space=vmem, size = 0x2000, scoped, tag = 'input window, operand 1, single buffered']
    #allocation6 [shape = 's32[1]{0}', space=sflag, size = 0x4, scoped, tag = 'scoped memory for tpu_custom_call.1']
    #allocation7 [shape = 'u8[8192]{0}', space=vmem, size = 0x2000, scoped, tag = 'output window, operand 0, single buffered']
    %7 = vsyncpa [#allocation3], 0
    %8 = vsyncpa [#allocation6], 0
    %9 = vsyncpa [#allocation4], 0
    // Predicated region
    $region2: #{tpu_custom_call.1} parent=1 // pred_check
      _
    $region3: #{tpu_custom_call.1} parent=1 // pred_check_branch
      %11 = sbr.rel (0) target = $region5
    $region4: #{tpu_custom_call.1} parent=1 // pred_region
      %s13 = ssub.s32 256, 256
      %14 = vsyncadd [#allocation3], %s13
      %s16 = sshll.u32 [#allocation2], 4
      %s17 = int_to_ptr.vmem [resolvable:$true] %s16
      %19 = dma.hbm_to_vmem [thread:$0]  %s0, 256, %s17, [#allocation3]
    $region5: #{tpu_custom_call.1} parent=1 // pred_fallthru
      _
    // Predicated region
    $region6: #{tpu_custom_call.1} parent=1 // pred_check
      _
    $region7: #{tpu_custom_call.1} parent=1 // pred_check_branch
      %21 = sbr.rel (0) target = $region9
    $region8: #{tpu_custom_call.1} parent=1 // pred_region
      %s23 = ssub.s32 256, 256
      %24 = vsyncadd [#allocation6], %s23
      %s26 = sshll.u32 [#allocation5], 4
      %s27 = int_to_ptr.vmem [resolvable:$true] %s26
      %29 = dma.hbm_to_vmem [thread:$0]  %s1, 256, %s27, [#allocation6]
    $region9: #{tpu_custom_call.1} parent=1 // pred_fallthru
      _
    // Predicated region
    $region10: #{tpu_custom_call.1} parent=1 // pred_check
      _
    $region11: #{tpu_custom_call.1} parent=1 // pred_check_branch
      %31 = sbr.rel (0) target = $region13
    $region12: #{tpu_custom_call.1} parent=1 // pred_region
      %32 = dma.done [#allocation3], 256
    $region13: #{tpu_custom_call.1} parent=1 // pred_fallthru
      _
    // Predicated region
    $region14: #{tpu_custom_call.1} parent=1 // pred_check
      _
    $region15: #{tpu_custom_call.1} parent=1 // pred_check_branch
      %34 = sbr.rel (0) target = $region17
    $region16: #{tpu_custom_call.1} parent=1 // pred_region
      %35 = dma.done [#allocation6], 256
    $region17: #{tpu_custom_call.1} parent=1 // pred_fallthru
      _
    %v36 = vld [vmem:[#allocation2] sm:$0xff]
    %v37 = vld [vmem:[#allocation2 + $0x8] sm:$0xff]
    %v38 = vld [vmem:[#allocation5] sm:$0xff]
    %v39 = vld [vmem:[#allocation5 + $0x8] sm:$0xff]
    %v40 = vsub.f32 %v36, %v38
    %v41 = vsub.f32 %v37, %v39
    %v42 = vadd.f32 %v38, 0.0001
    %v43 = vadd.f32 %v39, 0.0001
    %v44 = vrcp.pop %v42
    %v45 = vmul.f32 %v40, %v44
    %v46 = vrcp.pop %v43
    %v47 = vmul.f32 %v41, %v46
    %v48 = vand.u32 2147483647, %v45
    %v49 = vand.u32 2147483647, %v47
    %v50 = vmul.f32 %v48, 0.5
    %v51 = vmul.f32 %v49, 0.5
    %v52 = vtanh.pop %v50
    %v53 = vtanh.pop %v51
    %v54 = vmul.f32 %v52, 0.5
    %v55 = vmul.f32 %v53, 0.5
    %v56 = vadd.f32 %v54, 0.5
    %v57 = vadd.f32 %v55, 0.5
    %58 = vst [vmem:[#allocation7] sm:$0xff] %v56
    %59 = vst [vmem:[#allocation7 + $0x8] sm:$0xff] %v57
    // Predicated region
    $region18: #{tpu_custom_call.1} parent=1 // pred_check
      _
    $region19: #{tpu_custom_call.1} parent=1 // pred_check_branch
      %61 = sbr.rel (0) target = $region21
    $region20: #{tpu_custom_call.1} parent=1 // pred_region
      %s63 = ssub.s32 256, 256
      %64 = vsyncadd [#allocation4], %s63
      %s66 = sshll.u32 [#allocation7], 4
      %s67 = int_to_ptr.vmem [resolvable:$true] %s66
      %69 = dma.vmem_to_hbm [thread:$0]  %s67, 256, %s2, [#allocation4]
    $region21: #{tpu_custom_call.1} parent=1 // pred_fallthru
      _
    // Predicated region
    $region22: #{tpu_custom_call.1} parent=1 // pred_check
      _
    $region23: #{tpu_custom_call.1} parent=1 // pred_check_branch
      %71 = sbr.rel (0) target = $region25
    $region24: #{tpu_custom_call.1} parent=1 // pred_region
      %72 = dma.done [#allocation4], 256
    $region25: #{tpu_custom_call.1} parent=1 // pred_fallthru
      _
    %73 = vsyncpa [#allocation3], 1
    %74 = vsyncpa [#allocation6], 1
    %75 = vsyncpa [#allocation4], 1

</llo_original>
